<compile_context>
chip_gen: v5e
topology: v5e:2x2
jax: 0.10.0
libtpu: 0.0.40
codegen_flags: <defaults>
</compile_context>

<pallas_src>
import jax
import jax.numpy as jnp
from jax.experimental import pallas as pl
from jax.experimental.pallas import tpu as pltpu


def _round_up(n: int, m: int) -> int:
    return ((n + m - 1) // m) * m


# ---------------------------------------------------------------------------
# Kernel body (shared by the gridless and batch-tiled paths).
# Weights are [in_features, out_features] (bf16); biases are [1, out_features]
# (f32) so the broadcast stays implicit in the vector add.
# ---------------------------------------------------------------------------
def sdn_kernel(x_ref, w1_ref, b1_ref, w2_ref, b2_ref, w3_ref, b3_ref, o_ref):
    # Layer 1: Linear + (dropout p=0 -> identity) + ReLU
    h1 = jnp.dot(x_ref[...], w1_ref[...], preferred_element_type=jnp.float32)
    h1 = jnp.maximum(h1 + b1_ref[...], 0.0)

    # Layer 2: Linear + (dropout p=0 -> identity) + ReLU
    h2 = jnp.dot(h1.astype(w2_ref.dtype), w2_ref[...],
                 preferred_element_type=jnp.float32)
    h2 = jnp.maximum(h2 + b2_ref[...], 0.0)

    # Layer 3: Linear (no activation)
    out = jnp.dot(h2.astype(w3_ref.dtype), w3_ref[...],
                  preferred_element_type=jnp.float32)
    o_ref[...] = (out + b3_ref[...]).astype(o_ref.dtype)


# ---------------------------------------------------------------------------
# Parameter init (mimics torch.nn.Linear uniform(-1/sqrt(fan_in), ...)) and
# lane-aligned / bf16 packing of the parameters for the kernel.
# ---------------------------------------------------------------------------
def init_params(key, input_size, output_size, l1=350, l2=400, dtype=jnp.float32):
    ks = jax.random.split(key, 6)

    def lin(kw, kb, fan_in, fan_out):
        bound = 1.0 / jnp.sqrt(jnp.asarray(fan_in, dtype))
        w = jax.random.uniform(kw, (fan_in, fan_out), dtype, -bound, bound)
        b = jax.random.uniform(kb, (1, fan_out), dtype, -bound, bound)
        return w, b

    w1, b1 = lin(ks[0], ks[1], input_size, l1)
    w2, b2 = lin(ks[2], ks[3], l1, l2)
    w3, b3 = lin(ks[4], ks[5], l2, output_size)
    return w1, b1, w2, b2, w3, b3


def pad_params(params, compute_dtype=jnp.bfloat16, align=128):
    """Zero-pad hidden/output dims to multiples of `align`; weights -> bf16,
    biases stay f32.  ReLU(0)=0 and zero weight rows add nothing, so the
    result equals the unpadded math (up to bf16 operand rounding)."""
    w1, b1, w2, b2, w3, b3 = params
    l1p = _round_up(w1.shape[1], align)
    l2p = _round_up(w2.shape[1], align)
    nop = _round_up(w3.shape[1], align)

    def pad_w(w, rows, cols):
        return jnp.pad(w, ((0, rows - w.shape[0]),
                           (0, cols - w.shape[1]))).astype(compute_dtype)

    def pad_b(b, cols):
        return jnp.pad(b, ((0, 0), (0, cols - b.shape[1]))).astype(jnp.float32)

    w1p = pad_w(w1, w1.shape[0], l1p)
    w2p = pad_w(w2, l1p, l2p)
    w3p = pad_w(w3, l2p, nop)
    return (w1p, pad_b(b1, l1p), w2p, pad_b(b2, l2p), w3p, pad_b(b3, nop))


# ---------------------------------------------------------------------------
# Forward wrappers
# ---------------------------------------------------------------------------
def _sdn_forward_small(x, padded_params, out_size):
    """Gridless path: everything VMEM-resident, no pipeline overhead."""
    w1, b1, w2, b2, w3, b3 = padded_params
    B = x.shape[0]
    n_out_pad = w3.shape[1]

    # Sublane-align the batch so loads/stores are unmasked full vregs.
    Bp = max(8, _round_up(B, 8))
    x_p = jnp.pad(x, ((0, Bp - B), (0, 0))).astype(w1.dtype)

    vmem = pl.BlockSpec(memory_space=pltpu.MemorySpace.VMEM)
    out_padded = pl.pallas_call(
        sdn_kernel,
        out_shape=jax.ShapeDtypeStruct((Bp, n_out_pad), jnp.float32),
        in_specs=[vmem] * 7,
        out_specs=vmem,
    )(x_p, w1, b1, w2, b2, w3, b3)
    return out_padded[:B, :out_size]


def _sdn_forward_batched(x, padded_params, out_size, tm=256):
    """Large-batch path: grid over batch tiles ("parallel" -> megacore / v7x
    2-TC sharding); weights/biases stay resident via constant index_maps,
    x/out stream through the auto-pipeline."""
    w1, b1, w2, b2, w3, b3 = padded_params
    B = x.shape[0]
    in_feat = x.shape[1]
    n_out_pad = w3.shape[1]

    Bp = _round_up(B, tm)
    x_p = jnp.pad(x, ((0, Bp - B), (0, 0))).astype(w1.dtype)

    const = lambda shape: pl.BlockSpec(shape, lambda i: (0,) * len(shape))

    out_padded = pl.pallas_call(
        sdn_kernel,
        out_shape=jax.ShapeDtypeStruct((Bp, n_out_pad), jnp.float32),
        grid=(Bp // tm,),
        in_specs=[
            pl.BlockSpec((tm, in_feat), lambda i: (i, 0)),
            const(w1.shape), const(b1.shape),
            const(w2.shape), const(b2.shape),
            const(w3.shape), const(b3.shape),
        ],
        out_specs=pl.BlockSpec((tm, n_out_pad), lambda i: (i, 0)),
        compiler_params=pltpu.CompilerParams(
            dimension_semantics=("parallel",)),
    )(x_p, w1, b1, w2, b2, w3, b3)
    return out_padded[:B, :out_size]


def sdn_forward(x, padded_params, out_size, batch_tile=256):
    if x.shape[0] >= batch_tile:
        return _sdn_forward_batched(x, padded_params, out_size, tm=batch_tile)
    return _sdn_forward_small(x, padded_params, out_size)


# ---------------------------------------------------------------------------
# Plain-JAX reference of the same math (same bf16-operand / f32-accum scheme)
# ---------------------------------------------------------------------------
def sdn_reference(x, padded_params, out_size):
    w1, b1, w2, b2, w3, b3 = padded_params
    xb = x.astype(w1.dtype)
    h1 = jnp.maximum(jnp.dot(xb, w1, preferred_element_type=jnp.float32) + b1, 0.0)
    h2 = jnp.maximum(jnp.dot(h1.astype(w2.dtype), w2,
                             preferred_element_type=jnp.float32) + b2, 0.0)
    out = jnp.dot(h2.astype(w3.dtype), w3,
                  preferred_element_type=jnp.float32) + b3
    return out[:, :out_size]


if __name__ == "__main__":
    key = jax.random.PRNGKey(0)
    k_x, k_xb, k_p = jax.random.split(key, 3)

    # Forward-consistent shapes: 16 sensors -> 64-dim state, hidden 350/400.
    input_size, output_size = 16, 64
    l1, l2 = 350, 400

    params_f32 = init_params(k_p, input_size, output_size, l1, l2)
    padded = pad_params(params_f32)

    # --- Small-batch (gridless, VMEM-resident) path --------------------------
    B = 8
    x = jax.random.normal(k_x, (B, input_size), jnp.float32)
    out = sdn_forward(x, padded, output_size)
    jax.block_until_ready(out)
    assert out.shape == (B, output_size)

    ref = sdn_reference(x, padded, output_size)
    assert jnp.allclose(out, ref, atol=2e-3, rtol=2e-3)

    # Sanity check vs the full-f32 math of the original module (bf16 operand
    # rounding only -> loose tolerance).
    w1, b1, w2, b2, w3, b3 = params_f32
    ref_f32 = jnp.maximum(x @ w1 + b1, 0.0)
    ref_f32 = jnp.maximum(ref_f32 @ w2 + b2, 0.0)
    ref_f32 = ref_f32 @ w3 + b3
    assert jnp.allclose(out, ref_f32, atol=5e-2, rtol=5e-2)

    # --- Batched (grid over batch tiles, "parallel") path --------------------
    Bb = 512
    xb = jax.random.normal(k_xb, (Bb, input_size), jnp.float32)
    out_b = sdn_forward(xb, padded, output_size, batch_tile=256)
    jax.block_until_ready(out_b)
    assert out_b.shape == (Bb, output_size)
    ref_b = sdn_reference(xb, padded, output_size)
    assert jnp.allclose(out_b, ref_b, atol=2e-3, rtol=2e-3)

    print("KERNEL_OK")
</pallas_src>

<mosaic_0001>
module attributes {stable_mosaic.version = 11 : i64} {
  func.func @sdn_kernel(%arg0: memref<8x16xbf16, #tpu.memory_space<vmem>>, %arg1: memref<16x384xbf16, #tpu.memory_space<vmem>>, %arg2: memref<1x384xf32, #tpu.memory_space<vmem>>, %arg3: memref<384x512xbf16, #tpu.memory_space<vmem>>, %arg4: memref<1x512xf32, #tpu.memory_space<vmem>>, %arg5: memref<512x128xbf16, #tpu.memory_space<vmem>>, %arg6: memref<1x128xf32, #tpu.memory_space<vmem>>, %arg7: memref<8x128xf32, #tpu.memory_space<vmem>>) attributes {dimension_semantics = [], scalar_prefetch = 0 : i64, scratch_operands = 0 : i64, tpu.core_type = #tpu.core_type<tc>} {
    %c0 = arith.constant 0 : index
    %c0_0 = arith.constant 0 : index
    %0 = vector.load %arg0[%c0, %c0_0] : memref<8x16xbf16, #tpu.memory_space<vmem>>, vector<8x16xbf16>
    %c0_1 = arith.constant 0 : index
    %c0_2 = arith.constant 0 : index
    %1 = vector.load %arg1[%c0_1, %c0_2] : memref<16x384xbf16, #tpu.memory_space<vmem>>, vector<16x384xbf16>
    %cst = arith.constant dense<0.000000e+00> : vector<8x384xf32>
    %2 = tpu.matmul %0, %1, %cst {dimension_numbers = #tpu.dot_dimension_numbers<[1], [0], [0], [1], [0, 0, 1, 1], [], []>} : vector<8x16xbf16>, vector<16x384xbf16>, vector<8x384xf32> -> vector<8x384xf32>
    %c0_3 = arith.constant 0 : index
    %c0_4 = arith.constant 0 : index
    %3 = vector.load %arg2[%c0_3, %c0_4] : memref<1x384xf32, #tpu.memory_space<vmem>>, vector<1x384xf32>
    %4 = vector.broadcast %3 : vector<1x384xf32> to vector<8x384xf32>
    %5 = arith.addf %2, %4 : vector<8x384xf32>
    %cst_5 = arith.constant 0.000000e+00 : f32
    %6 = vector.broadcast %cst_5 : f32 to vector<8x384xf32>
    %7 = arith.maximumf %5, %6 : vector<8x384xf32>
    %8 = arith.truncf %7 : vector<8x384xf32> to vector<8x384xbf16>
    %c0_6 = arith.constant 0 : index
    %c0_7 = arith.constant 0 : index
    %9 = vector.load %arg3[%c0_6, %c0_7] : memref<384x512xbf16, #tpu.memory_space<vmem>>, vector<384x512xbf16>
    %cst_8 = arith.constant dense<0.000000e+00> : vector<8x512xf32>
    %10 = tpu.matmul %8, %9, %cst_8 {dimension_numbers = #tpu.dot_dimension_numbers<[1], [0], [0], [1], [0, 0, 1, 1], [], []>} : vector<8x384xbf16>, vector<384x512xbf16>, vector<8x512xf32> -> vector<8x512xf32>
    %c0_9 = arith.constant 0 : index
    %c0_10 = arith.constant 0 : index
    %11 = vector.load %arg4[%c0_9, %c0_10] : memref<1x512xf32, #tpu.memory_space<vmem>>, vector<1x512xf32>
    %12 = vector.broadcast %11 : vector<1x512xf32> to vector<8x512xf32>
    %13 = arith.addf %10, %12 : vector<8x512xf32>
    %cst_11 = arith.constant 0.000000e+00 : f32
    %14 = vector.broadcast %cst_11 : f32 to vector<8x512xf32>
    %15 = arith.maximumf %13, %14 : vector<8x512xf32>
    %16 = arith.truncf %15 : vector<8x512xf32> to vector<8x512xbf16>
    %c0_12 = arith.constant 0 : index
    %c0_13 = arith.constant 0 : index
    %17 = vector.load %arg5[%c0_12, %c0_13] : memref<512x128xbf16, #tpu.memory_space<vmem>>, vector<512x128xbf16>
    %cst_14 = arith.constant dense<0.000000e+00> : vector<8x128xf32>
    %18 = tpu.matmul %16, %17, %cst_14 {dimension_numbers = #tpu.dot_dimension_numbers<[1], [0], [0], [1], [0, 0, 1, 1], [], []>} : vector<8x512xbf16>, vector<512x128xbf16>, vector<8x128xf32> -> vector<8x128xf32>
    %c0_15 = arith.constant 0 : index
    %c0_16 = arith.constant 0 : index
    %19 = vector.load %arg6[%c0_15, %c0_16] : memref<1x128xf32, #tpu.memory_space<vmem>>, vector<1x128xf32>
    %20 = vector.broadcast %19 : vector<1x128xf32> to vector<8x128xf32>
    %21 = arith.addf %18, %20 : vector<8x128xf32>
    %c0_17 = arith.constant 0 : index
    %c0_18 = arith.constant 0 : index
    %22 = vector.load %arg7[%c0_17, %c0_18] : memref<8x128xf32, #tpu.memory_space<vmem>>, vector<8x128xf32>
    tpu.vector_store %arg7[%c0_17, %c0_18], %21 {strides = array<i32>} : memref<8x128xf32, #tpu.memory_space<vmem>>, vector<8x128xf32>,
    return
  }
}

</mosaic_0001>

<llo_original>
// kernel: tpu_custom_call.1
$region0: #{tpu_custom_call.1}
  #allocation0 [shape = 'u32[]', space=smem, size = 0x4, offset = 0x4, fixed_abs, tag = 'smem constant byte address 0x4 - core index']
  #allocation1 [shape = 'u32[72,128]{1,0:T(1,128)}', space=vmem, size = 0x9000, scoped, tag = 'internal scratch']
  %s0 = inlined_call_operand.hbm [shape: bf16[8,16], index: 0, kind: input, shape index: {}]
  %s1 = inlined_call_operand.hbm [shape: bf16[16,384], index: 1, kind: input, shape index: {}]
  %s2 = inlined_call_operand.hbm [shape: f32[1,384], index: 2, kind: input, shape index: {}]
  %s3 = inlined_call_operand.hbm [shape: bf16[384,512], index: 3, kind: input, shape index: {}]
  %s4 = inlined_call_operand.hbm [shape: f32[1,512], index: 4, kind: input, shape index: {}]
  %s5 = inlined_call_operand.hbm [shape: bf16[512,128], index: 5, kind: input, shape index: {}]
  %s6 = inlined_call_operand.vmem [shape: f32[1,128], index: 6, kind: input, shape index: {}]
  %s7 = inlined_call_operand.hbm [shape: f32[8,128], index: 7, kind: output, shape index: {}]
  %s8 = sld [smem:[#allocation0]]
  $region62: #{tpu_custom_call.1} parent=0
    _
  %s10 = ssub.s32 1, %s8
  %s11 = scalar_select 0, %s10, %s8
  $region1: #{tpu_custom_call.1} parent=0
    #allocation2 [shape = 'u8[2048]{0}', space=vmem, size = 0x800, scoped, tag = 'input window, operand 0, single buffered']
    #allocation3 [shape = 's32[1]{0}', space=sflag, size = 0x4, scoped, tag = 'scoped memory for tpu_custom_call.1']
    #allocation4 [shape = 's32[1]{0}', space=sflag, size = 0x4, scoped, tag = 'scoped memory for tpu_custom_call.1']
    #allocation5 [shape = 'u8[12288]{0}', space=vmem, size = 0x3000, scoped, tag = 'input window, operand 1, single buffered']
    #allocation6 [shape = 's32[1]{0}', space=sflag, size = 0x4, scoped, tag = 'scoped memory for tpu_custom_call.1']
    #allocation7 [shape = 'u8[1536]{0}', space=vmem, size = 0x800, scoped, tag = 'input window, operand 2, single buffered']
    #allocation8 [shape = 'u8[393216]{0}', space=vmem, size = 0x60000, scoped, tag = 'input window, operand 3, single buffered']
    #allocation9 [shape = 's32[1]{0}', space=sflag, size = 0x4, scoped, tag = 'scoped memory for tpu_custom_call.1']
    #allocation10 [shape = 'u8[2048]{0}', space=vmem, size = 0x800, scoped, tag = 'input window, operand 4, single buffered']
    #allocation11 [shape = 'u8[131072]{0}', space=vmem, size = 0x20000, scoped, tag = 'input window, operand 5, single buffered']
    #allocation12 [shape = 's32[1]{0}', space=sflag, size = 0x4, scoped, tag = 'scoped memory for tpu_custom_call.1']
    #allocation13 [shape = 'u8[4096]{0}', space=vmem, size = 0x1000, scoped, tag = 'output window, operand 0, single buffered']
    %12 = vsyncpa [#allocation3], 0
    %13 = vsyncpa [#allocation6], 0
    %14 = vsyncpa [#allocation9], 0
    %15 = vsyncpa [#allocation12], 0
    %16 = vsyncpa [#allocation4], 0
    // Predicated region
    $region2: #{tpu_custom_call.1} parent=1 // pred_check
      _
    $region3: #{tpu_custom_call.1} parent=1 // pred_check_branch
      %18 = sbr.rel (0) target = $region5
    $region4: #{tpu_custom_call.1} parent=1 // pred_region
      %20 = vsyncadd [#allocation3], 0
      %s22 = sshll.u32 %s0, 4
      %s23 = int_to_ptr.hbm [resolvable:$true] %s22
      %s24 = sshll.u32 [#allocation2], 4
      %s25 = int_to_ptr.vmem [resolvable:$true] %s24
      %27 = dma.hbm_to_vmem [thread:$0]  %s23, 64, %s25, [#allocation3]
    $region5: #{tpu_custom_call.1} parent=1 // pred_fallthru
      _
    // Predicated region
    $region6: #{tpu_custom_call.1} parent=1 // pred_check
      _
    $region7: #{tpu_custom_call.1} parent=1 // pred_check_branch
      %29 = sbr.rel (0) target = $region9
    $region8: #{tpu_custom_call.1} parent=1 // pred_region
      %31 = vsyncadd [#allocation6], 0
      %s32 = sshll.u32 %s1, 4
      %s33 = int_to_ptr.hbm [resolvable:$true] %s32
      %s34 = sshll.u32 [#allocation5], 4
      %s35 = int_to_ptr.vmem [resolvable:$true] %s34
      %40 = dma.hbm_to_vmem [thread:$0]  %s33, 384, %s35, [#allocation6], 192, 192, 12
    $region9: #{tpu_custom_call.1} parent=1 // pred_fallthru
      _
    // Predicated region
    $region10: #{tpu_custom_call.1} parent=1 // pred_check
      _
    $region11: #{tpu_custom_call.1} parent=1 // pred_check_branch
      %42 = sbr.rel (0) target = $region13
    $region12: #{tpu_custom_call.1} parent=1 // pred_region
      %44 = vsyncadd [#allocation6], 0
      %s46 = sshll.u32 %s2, 4
      %s47 = int_to_ptr.hbm [resolvable:$true] %s46
      %s48 = sshll.u32 [#allocation7], 4
      %s49 = int_to_ptr.vmem [resolvable:$true] %s48
      %51 = dma.hbm_to_vmem [thread:$0]  %s47, 48, %s49, [#allocation6]
    $region13: #{tpu_custom_call.1} parent=1 // pred_fallthru
      _
    // Predicated region
    $region14: #{tpu_custom_call.1} parent=1 // pred_check
      _
    $region15: #{tpu_custom_call.1} parent=1 // pred_check_branch
      %53 = sbr.rel (0) target = $region17
    $region16: #{tpu_custom_call.1} parent=1 // pred_region
      %55 = vsyncadd [#allocation9], 0
      %s56 = sshll.u32 %s3, 4
      %s57 = int_to_ptr.hbm [resolvable:$true] %s56
      %s58 = sshll.u32 [#allocation8], 4
      %s59 = int_to_ptr.vmem [resolvable:$true] %s58
      %64 = dma.hbm_to_vmem [thread:$0]  %s57, 12288, %s59, [#allocation9], 256, 256, 16
    $region17: #{tpu_custom_call.1} parent=1 // pred_fallthru
      _
    // Predicated region
    $region18: #{tpu_custom_call.1} parent=1 // pred_check
      _
    $region19: #{tpu_custom_call.1} parent=1 // pred_check_branch
      %66 = sbr.rel (0) target = $region21
    $region20: #{tpu_custom_call.1} parent=1 // pred_region
      %68 = vsyncadd [#allocation9], 0
      %s70 = sshll.u32 %s4, 4
      %s71 = int_to_ptr.hbm [resolvable:$true] %s70
      %s72 = sshll.u32 [#allocation10], 4
      %s73 = int_to_ptr.vmem [resolvable:$true] %s72
      %75 = dma.hbm_to_vmem [thread:$0]  %s71, 64, %s73, [#allocation9]
    $region21: #{tpu_custom_call.1} parent=1 // pred_fallthru
      _
    // Predicated region
    $region22: #{tpu_custom_call.1} parent=1 // pred_check
      _
    $region23: #{tpu_custom_call.1} parent=1 // pred_check_branch
      %77 = sbr.rel (0) target = $region25
    $region24: #{tpu_custom_call.1} parent=1 // pred_region
      %79 = vsyncadd [#allocation12], 0
      %s80 = sshll.u32 %s5, 4
      %s81 = int_to_ptr.hbm [resolvable:$true] %s80
      %s82 = sshll.u32 [#allocation11], 4
      %s83 = int_to_ptr.vmem [resolvable:$true] %s82
      %88 = dma.hbm_to_vmem [thread:$0]  %s81, 4096, %s83, [#allocation12], 64, 64, 4
    $region25: #{tpu_custom_call.1} parent=1 // pred_fallthru
      _
    // Predicated region
    $region26: #{tpu_custom_call.1} parent=1 // pred_check
      _
    $region27: #{tpu_custom_call.1} parent=1 // pred_check_branch
      %90 = sbr.rel (0) target = $region29
    $region28: #{tpu_custom_call.1} parent=1 // pred_region
      _
    $region29: #{tpu_custom_call.1} parent=1 // pred_fallthru
      _
    // Predicated region
    $region30: #{tpu_custom_call.1} parent=1 // pred_check
      _
    $region31: #{tpu_custom_call.1} parent=1 // pred_check_branch
      %92 = sbr.rel (0) target = $region33
    $region32: #{tpu_custom_call.1} parent=1 // pred_region
      %94 = dma.done [#allocation3], 64
    $region33: #{tpu_custom_call.1} parent=1 // pred_fallthru
      _
    // Predicated region
    $region34: #{tpu_custom_call.1} parent=1 // pred_check
      _
    $region35: #{tpu_custom_call.1} parent=1 // pred_check_branch
      %96 = sbr.rel (0) target = $region37
    $region36: #{tpu_custom_call.1} parent=1 // pred_region
      %98 = dma.done [#allocation6], 384
    $region37: #{tpu_custom_call.1} parent=1 // pred_fallthru
      _
    // Predicated region
    $region38: #{tpu_custom_call.1} parent=1 // pred_check
      _
    $region39: #{tpu_custom_call.1} parent=1 // pred_check_branch
      %100 = sbr.rel (0) target = $region41
    $region40: #{tpu_custom_call.1} parent=1 // pred_region
      %102 = dma.done [#allocation6], 48
    $region41: #{tpu_custom_call.1} parent=1 // pred_fallthru
      _
    // Predicated region
    $region42: #{tpu_custom_call.1} parent=1 // pred_check
      _
    $region43: #{tpu_custom_call.1} parent=1 // pred_check_branch
      %104 = sbr.rel (0) target = $region45
    $region44: #{tpu_custom_call.1} parent=1 // pred_region
      %106 = dma.done [#allocation9], 12288
    $region45: #{tpu_custom_call.1} parent=1 // pred_fallthru
      _
    // Predicated region
    $region46: #{tpu_custom_call.1} parent=1 // pred_check
      _
    $region47: #{tpu_custom_call.1} parent=1 // pred_check_branch
      %108 = sbr.rel (0) target = $region49
    $region48: #{tpu_custom_call.1} parent=1 // pred_region
      %110 = dma.done [#allocation9], 64
    $region49: #{tpu_custom_call.1} parent=1 // pred_fallthru
      _
    // Predicated region
    $region50: #{tpu_custom_call.1} parent=1 // pred_check
      _
    $region51: #{tpu_custom_call.1} parent=1 // pred_check_branch
      %112 = sbr.rel (0) target = $region53
    $region52: #{tpu_custom_call.1} parent=1 // pred_region
      %114 = dma.done [#allocation12], 4096
    $region53: #{tpu_custom_call.1} parent=1 // pred_fallthru
      _
    %v116 = vld [vmem:[#allocation2] sm:$0xf]
    %v117 = vld [vmem:[#allocation5] sm:$0xff]
    %v118 = vld [vmem:[#allocation5 + $0x8] sm:$0xf]
    %v119 = vld [vmem:[#allocation5 + $0xc] sm:$0xff]
    %v120 = vld [vmem:[#allocation5 + $0x14] sm:$0xf]
    %v121 = vld [vmem:[#allocation7] sm:$0x7]
    %v123 = vperm.slane %v121, 0
    %v124 = vperm.slane %v121, 1
    %v125 = vperm.slane %v121, 2
    %v133 = vunpack.c.l.b16 %v117
    %v134 = vunpack.c.h.b16 %v117
    %v135 = vunpack.c.l.b16 %v118
    %v136 = vunpack.c.l.b16 %v119
    %v137 = vunpack.c.h.b16 %v119
    %v138 = vunpack.c.l.b16 %v120
    %v139 = vpack.c.b16 %v136, %v133
    %v140 = vpack.c.b16 %v137, %v134
    %v141 = vpack.c.b16 %v138, %v135
    %vm145 = vcmask 130048
    %v147 = vsel %vm145, %v116, 0
    %149 = vmatpush.bf16.msra.mxu0 0
    %150 = vmatpush.bf16.msra.mxu0 0
    %151 = vmatpush.bf16.msra.mxu0 0
    %152 = vmatpush.bf16.msra.mxu0 0
    %153 = vmatpush.bf16.msra.mxu0 0
    %154 = vmatpush.bf16.msra.mxu0 0
    %155 = vmatpush.bf16.msra.mxu0 0
    %156 = vmatpush.bf16.msra.mxu0 %v139
    %157 = vmatmul.bf16.gmra.mxu0 %v147
    %v158 = vpop.f32.mrf.mxu0
    %v159 = vadd.f32 %v123, %v158
    %v160 = vpop.f32.mrf.mxu0
    %161 = vdwg.mxu0
    %162 = vmatpush.bf16.msra.mxu0 0
    %163 = vmatpush.bf16.msra.mxu0 0
    %164 = vmatpush.bf16.msra.mxu0 0
    %165 = vmatpush.bf16.msra.mxu0 0
    %166 = vmatpush.bf16.msra.mxu0 0
    %167 = vmatpush.bf16.msra.mxu0 0
    %168 = vmatpush.bf16.msra.mxu0 0
    %169 = vmatpush.bf16.msra.mxu0 %v140
    %170 = vmatmul.bf16.gmra.mxu0 %v147
    %v171 = vpop.f32.mrf.mxu0
    %v172 = vadd.f32 %v124, %v171
    %v173 = vpop.f32.mrf.mxu0
    %174 = vdwg.mxu0
    %175 = vmatpush.bf16.msra.mxu0 0
    %176 = vmatpush.bf16.msra.mxu0 0
    %177 = vmatpush.bf16.msra.mxu0 0
    %178 = vmatpush.bf16.msra.mxu0 0
    %179 = vmatpush.bf16.msra.mxu0 0
    %180 = vmatpush.bf16.msra.mxu0 0
    %181 = vmatpush.bf16.msra.mxu0 0
    %182 = vmatpush.bf16.msra.mxu0 %v141
    %183 = vmatmul.bf16.gmra.mxu0 %v147
    %v184 = vpop.f32.mrf.mxu0
    %v185 = vadd.f32 %v125, %v184
    %v186 = vpop.f32.mrf.mxu0
    %187 = vdwg.mxu0
    %v188 = vmax.f32 %v159, 0.0
    %v189 = vmax.f32 %v172, 0.0
    %v190 = vmax.f32 %v185, 0.0
    %v191 = vpack.c.bf16 %v188, %v188
    %v192 = vpack.c.bf16 %v189, %v189
    %v193 = vpack.c.bf16 %v190, %v190
    %v194 = vld [vmem:[#allocation8] sm:$0xff]
    %v195 = vld [vmem:[#allocation8 + $0x8] sm:$0xff]
    %v196 = vld [vmem:[#allocation8 + $0x10] sm:$0xff]
    %v197 = vld [vmem:[#allocation8 + $0x18] sm:$0xff]
    %v198 = vld [vmem:[#allocation8 + $0x20] sm:$0xff]
    %v199 = vld [vmem:[#allocation8 + $0x28] sm:$0xff]
    %v200 = vld [vmem:[#allocation8 + $0x30] sm:$0xff]
    %v201 = vld [vmem:[#allocation8 + $0x38] sm:$0xff]
    %v202 = vld [vmem:[#allocation8 + $0x40] sm:$0xff]
    %v203 = vld [vmem:[#allocation8 + $0x48] sm:$0xff]
    %v204 = vld [vmem:[#allocation8 + $0x50] sm:$0xff]
    %v205 = vld [vmem:[#allocation8 + $0x58] sm:$0xff]
    %v206 = vld [vmem:[#allocation8 + $0x60] sm:$0xff]
    %v207 = vld [vmem:[#allocation8 + $0x68] sm:$0xff]
    %v208 = vld [vmem:[#allocation8 + $0x70] sm:$0xff]
    %v209 = vld [vmem:[#allocation8 + $0x78] sm:$0xff]
    %v210 = vld [vmem:[#allocation8 + $0x80] sm:$0xff]
    %v211 = vld [vmem:[#allocation8 + $0x88] sm:$0xff]
    %v212 = vld [vmem:[#allocation8 + $0x90] sm:$0xff]
    %v213 = vld [vmem:[#allocation8 + $0x98] sm:$0xff]
    %v214 = vld [vmem:[#allocation8 + $0xa0] sm:$0xff]
    %v215 = vld [vmem:[#allocation8 + $0xa8] sm:$0xff]
    %v216 = vld [vmem:[#allocation8 + $0xb0] sm:$0xff]
    %v217 = vld [vmem:[#allocation8 + $0xb8] sm:$0xff]
    %v218 = vld [vmem:[#allocation8 + $0xc0] sm:$0xff]
    %v219 = vld [vmem:[#allocation8 + $0xc8] sm:$0xff]
    %v220 = vld [vmem:[#allocation8 + $0xd0] sm:$0xff]
    %v221 = vld [vmem:[#allocation8 + $0xd8] sm:$0xff]
    %v222 = vld [vmem:[#allocation8 + $0xe0] sm:$0xff]
    %v223 = vld [vmem:[#allocation8 + $0xe8] sm:$0xff]
    %v224 = vld [vmem:[#allocation8 + $0xf0] sm:$0xff]
    %v225 = vld [vmem:[#allocation8 + $0xf8] sm:$0xff]
    %v226 = vld [vmem:[#allocation8 + $0x100] sm:$0xff]
    %v227 = vld [vmem:[#allocation8 + $0x108] sm:$0xff]
    %v228 = vld [vmem:[#allocation8 + $0x110] sm:$0xff]
    %v229 = vld [vmem:[#allocation8 + $0x118] sm:$0xff]
    %v230 = vld [vmem:[#allocation8 + $0x120] sm:$0xff]
    %v231 = vld [vmem:[#allocation8 + $0x128] sm:$0xff]
    %v232 = vld [vmem:[#allocation8 + $0x130] sm:$0xff]
    %v233 = vld [vmem:[#allocation8 + $0x138] sm:$0xff]
    %v234 = vld [vmem:[#allocation8 + $0x140] sm:$0xff]
    %v235 = vld [vmem:[#allocation8 + $0x148] sm:$0xff]
    %v236 = vld [vmem:[#allocation8 + $0x150] sm:$0xff]
    %v237 = vld [vmem:[#allocation8 + $0x158] sm:$0xff]
    %v238 = vld [vmem:[#allocation8 + $0x160] sm:$0xff]
    %v239 = vld [vmem:[#allocation8 + $0x168] sm:$0xff]
    %v240 = vld [vmem:[#allocation8 + $0x170] sm:$0xff]
    %v241 = vld [vmem:[#allocation8 + $0x178] sm:$0xff]
    %v242 = vld [vmem:[#allocation8 + $0x180] sm:$0xff]
    %v243 = vld [vmem:[#allocation8 + $0x188] sm:$0xff]
    %v244 = vld [vmem:[#allocation8 + $0x190] sm:$0xff]
    %v245 = vld [vmem:[#allocation8 + $0x198] sm:$0xff]
    %v246 = vld [vmem:[#allocation8 + $0x1a0] sm:$0xff]
    %v247 = vld [vmem:[#allocation8 + $0x1a8] sm:$0xff]
    %v248 = vld [vmem:[#allocation8 + $0x1b0] sm:$0xff]
    %v249 = vld [vmem:[#allocation8 + $0x1b8] sm:$0xff]
    %v250 = vld [vmem:[#allocation8 + $0x1c0] sm:$0xff]
    %v251 = vld [vmem:[#allocation8 + $0x1c8] sm:$0xff]
    %v252 = vld [vmem:[#allocation8 + $0x1d0] sm:$0xff]
    %v253 = vld [vmem:[#allocation8 + $0x1d8] sm:$0xff]
    %v254 = vld [vmem:[#allocation8 + $0x1e0] sm:$0xff]
    %v255 = vld [vmem:[#allocation8 + $0x1e8] sm:$0xff]
    %v256 = vld [vmem:[#allocation8 + $0x1f0] sm:$0xff]
    %v257 = vld [vmem:[#allocation8 + $0x1f8] sm:$0xff]
    %v258 = vld [vmem:[#allocation8 + $0x200] sm:$0xff]
    %v259 = vld [vmem:[#allocation8 + $0x208] sm:$0xff]
    %v260 = vld [vmem:[#allocation8 + $0x210] sm:$0xff]
    %v261 = vld [vmem:[#allocation8 + $0x218] sm:$0xff]
    %v262 = vld [vmem:[#allocation8 + $0x220] sm:$0xff]
    %v263 = vld [vmem:[#allocation8 + $0x228] sm:$0xff]
    %v264 = vld [vmem:[#allocation8 + $0x230] sm:$0xff]
    %v265 = vld [vmem:[#allocation8 + $0x238] sm:$0xff]
    %v266 = vld [vmem:[#allocation8 + $0x240] sm:$0xff]
    %v267 = vld [vmem:[#allocation8 + $0x248] sm:$0xff]
    %v268 = vld [vmem:[#allocation8 + $0x250] sm:$0xff]
    %v269 = vld [vmem:[#allocation8 + $0x258] sm:$0xff]
    %v270 = vld [vmem:[#allocation8 + $0x260] sm:$0xff]
    %v271 = vld [vmem:[#allocation8 + $0x268] sm:$0xff]
    %v272 = vld [vmem:[#allocation8 + $0x270] sm:$0xff]
    %v273 = vld [vmem:[#allocation8 + $0x278] sm:$0xff]
    %v274 = vld [vmem:[#allocation8 + $0x280] sm:$0xff]
    %v275 = vld [vmem:[#allocation8 + $0x288] sm:$0xff]
    %v276 = vld [vmem:[#allocation8 + $0x290] sm:$0xff]
    %v277 = vld [vmem:[#allocation8 + $0x298] sm:$0xff]
    %v278 = vld [vmem:[#allocation8 + $0x2a0] sm:$0xff]
    %v279 = vld [vmem:[#allocation8 + $0x2a8] sm:$0xff]
    %v280 = vld [vmem:[#allocation8 + $0x2b0] sm:$0xff]
    %v281 = vld [vmem:[#allocation8 + $0x2b8] sm:$0xff]
    %v282 = vld [vmem:[#allocation8 + $0x2c0] sm:$0xff]
    %v283 = vld [vmem:[#allocation8 + $0x2c8] sm:$0xff]
    %v284 = vld [vmem:[#allocation8 + $0x2d0] sm:$0xff]
    %v285 = vld [vmem:[#allocation8 + $0x2d8] sm:$0xff]
    %v286 = vld [vmem:[#allocation8 + $0x2e0] sm:$0xff]
    %v287 = vld [vmem:[#allocation8 + $0x2e8] sm:$0xff]
    %v288 = vld [vmem:[#allocation8 + $0x2f0] sm:$0xff]
    %v289 = vld [vmem:[#allocation8 + $0x2f8] sm:$0xff]
    %v290 = vld [vmem:[#allocation10] sm:$0xf]
    %v292 = vperm.slane %v290, 0
    %v293 = vperm.slane %v290, 1
    %v294 = vperm.slane %v290, 2
    %v295 = vperm.slane %v290, 3
    %v396 = vunpack.c.l.b16 %v194
    %v397 = vunpack.c.h.b16 %v194
    %v398 = vunpack.c.l.b16 %v195
    %v399 = vunpack.c.h.b16 %v195
    %v400 = vunpack.c.l.b16 %v196
    %v401 = vunpack.c.h.b16 %v196
    %v402 = vunpack.c.l.b16 %v197
    %v403 = vunpack.c.h.b16 %v197
    %v404 = vunpack.c.l.b16 %v198
    %v405 = vunpack.c.h.b16 %v198
    %v406 = vunpack.c.l.b16 %v199
    %v407 = vunpack.c.h.b16 %v199
    %v408 = vunpack.c.l.b16 %v200
    %v409 = vunpack.c.h.b16 %v200
    %v410 = vunpack.c.l.b16 %v201
    %v411 = vunpack.c.h.b16 %v201
    %v412 = vunpack.c.l.b16 %v202
    %v413 = vunpack.c.h.b16 %v202
    %v414 = vunpack.c.l.b16 %v203
    %v415 = vunpack.c.h.b16 %v203
    %v416 = vunpack.c.l.b16 %v204
    %v417 = vunpack.c.h.b16 %v204
    %v418 = vunpack.c.l.b16 %v205
    %v419 = vunpack.c.h.b16 %v205
    %v420 = vunpack.c.l.b16 %v206
    %v421 = vunpack.c.h.b16 %v206
    %v422 = vunpack.c.l.b16 %v207
    %v423 = vunpack.c.h.b16 %v207
    %v424 = vunpack.c.l.b16 %v208
    %v425 = vunpack.c.h.b16 %v208
    %v426 = vunpack.c.l.b16 %v209
    %v427 = vunpack.c.h.b16 %v209
    %v428 = vunpack.c.l.b16 %v210
    %v429 = vunpack.c.h.b16 %v210
    %v430 = vunpack.c.l.b16 %v211
    %v431 = vunpack.c.h.b16 %v211
    %v432 = vunpack.c.l.b16 %v212
    %v433 = vunpack.c.h.b16 %v212
    %v434 = vunpack.c.l.b16 %v213
    %v435 = vunpack.c.h.b16 %v213
    %v436 = vunpack.c.l.b16 %v214
    %v437 = vunpack.c.h.b16 %v214
    %v438 = vunpack.c.l.b16 %v215
    %v439 = vunpack.c.h.b16 %v215
    %v440 = vunpack.c.l.b16 %v216
    %v441 = vunpack.c.h.b16 %v216
    %v442 = vunpack.c.l.b16 %v217
    %v443 = vunpack.c.h.b16 %v217
    %v444 = vunpack.c.l.b16 %v218
    %v445 = vunpack.c.h.b16 %v218
    %v446 = vunpack.c.l.b16 %v219
    %v447 = vunpack.c.h.b16 %v219
    %v448 = vunpack.c.l.b16 %v220
    %v449 = vunpack.c.h.b16 %v220
    %v450 = vunpack.c.l.b16 %v221
    %v451 = vunpack.c.h.b16 %v221
    %v452 = vunpack.c.l.b16 %v222
    %v453 = vunpack.c.h.b16 %v222
    %v454 = vunpack.c.l.b16 %v223
    %v455 = vunpack.c.h.b16 %v223
    %v456 = vunpack.c.l.b16 %v224
    %v457 = vunpack.c.h.b16 %v224
    %v458 = vunpack.c.l.b16 %v225
    %v459 = vunpack.c.h.b16 %v225
    %v460 = vunpack.c.l.b16 %v226
    %v461 = vunpack.c.h.b16 %v226
    %v462 = vunpack.c.l.b16 %v227
    %v463 = vunpack.c.h.b16 %v227
    %v464 = vunpack.c.l.b16 %v228
    %v465 = vunpack.c.h.b16 %v228
    %v466 = vunpack.c.l.b16 %v229
    %v467 = vunpack.c.h.b16 %v229
    %v468 = vunpack.c.l.b16 %v230
    %v469 = vunpack.c.h.b16 %v230
    %v470 = vunpack.c.l.b16 %v231
    %v471 = vunpack.c.h.b16 %v231
    %v472 = vunpack.c.l.b16 %v232
    %v473 = vunpack.c.h.b16 %v232
    %v474 = vunpack.c.l.b16 %v233
    %v475 = vunpack.c.h.b16 %v233
    %v476 = vunpack.c.l.b16 %v234
    %v477 = vunpack.c.h.b16 %v234
    %v478 = vunpack.c.l.b16 %v235
    %v479 = vunpack.c.h.b16 %v235
    %v480 = vunpack.c.l.b16 %v236
    %v481 = vunpack.c.h.b16 %v236
    %v482 = vunpack.c.l.b16 %v237
    %v483 = vunpack.c.h.b16 %v237
    %v484 = vunpack.c.l.b16 %v238
    %v485 = vunpack.c.h.b16 %v238
    %v486 = vunpack.c.l.b16 %v239
    %v487 = vunpack.c.h.b16 %v239
    %v488 = vunpack.c.l.b16 %v240
    %v489 = vunpack.c.h.b16 %v240
    %v490 = vunpack.c.l.b16 %v241
    %v491 = vunpack.c.h.b16 %v241
    %v492 = vunpack.c.l.b16 %v242
    %v493 = vunpack.c.h.b16 %v242
    %v494 = vunpack.c.l.b16 %v243
    %v495 = vunpack.c.h.b16 %v243
    %v496 = vunpack.c.l.b16 %v244
    %v497 = vunpack.c.h.b16 %v244
    %v498 = vunpack.c.l.b16 %v245
    %v499 = vunpack.c.h.b16 %v245
    %v500 = vunpack.c.l.b16 %v246
    %v501 = vunpack.c.h.b16 %v246
    %v502 = vunpack.c.l.b16 %v247
    %v503 = vunpack.c.h.b16 %v247
    %v504 = vunpack.c.l.b16 %v248
    %v505 = vunpack.c.h.b16 %v248
    %v506 = vunpack.c.l.b16 %v249
    %v507 = vunpack.c.h.b16 %v249
    %v508 = vunpack.c.l.b16 %v250
    %v509 = vunpack.c.h.b16 %v250
    %v510 = vunpack.c.l.b16 %v251
    %v511 = vunpack.c.h.b16 %v251
    %v512 = vunpack.c.l.b16 %v252
    %v513 = vunpack.c.h.b16 %v252
    %v514 = vunpack.c.l.b16 %v253
    %v515 = vunpack.c.h.b16 %v253
    %v516 = vunpack.c.l.b16 %v254
    %v517 = vunpack.c.h.b16 %v254
    %v518 = vunpack.c.l.b16 %v255
    %v519 = vunpack.c.h.b16 %v255
    %v520 = vunpack.c.l.b16 %v256
    %v521 = vunpack.c.h.b16 %v256
    %v522 = vunpack.c.l.b16 %v257
    %v523 = vunpack.c.h.b16 %v257
    %v524 = vunpack.c.l.b16 %v258
    %v525 = vunpack.c.h.b16 %v258
    %v526 = vunpack.c.l.b16 %v259
    %v527 = vunpack.c.h.b16 %v259
    %v528 = vunpack.c.l.b16 %v260
    %v529 = vunpack.c.h.b16 %v260
    %v530 = vunpack.c.l.b16 %v261
    %v531 = vunpack.c.h.b16 %v261
    %v532 = vunpack.c.l.b16 %v262
    %v533 = vunpack.c.h.b16 %v262
    %v534 = vunpack.c.l.b16 %v263
    %v535 = vunpack.c.h.b16 %v263
    %v536 = vunpack.c.l.b16 %v264
    %v537 = vunpack.c.h.b16 %v264
    %v538 = vunpack.c.l.b16 %v265
    %v539 = vunpack.c.h.b16 %v265
    %v540 = vunpack.c.l.b16 %v266
    %v541 = vunpack.c.h.b16 %v266
    %v542 = vunpack.c.l.b16 %v267
    %v543 = vunpack.c.h.b16 %v267
    %v544 = vunpack.c.l.b16 %v268
    %v545 = vunpack.c.h.b16 %v268
    %v546 = vunpack.c.l.b16 %v269
    %v547 = vunpack.c.h.b16 %v269
    %v548 = vunpack.c.l.b16 %v270
    %v549 = vunpack.c.h.b16 %v270
    %v550 = vunpack.c.l.b16 %v271
    %v551 = vunpack.c.h.b16 %v271
    %v552 = vunpack.c.l.b16 %v272
    %v553 = vunpack.c.h.b16 %v272
    %v554 = vunpack.c.l.b16 %v273
    %v555 = vunpack.c.h.b16 %v273
    %v556 = vunpack.c.l.b16 %v274
    %v557 = vunpack.c.h.b16 %v274
    %v558 = vunpack.c.l.b16 %v275
    %v559 = vunpack.c.h.b16 %v275
    %v560 = vunpack.c.l.b16 %v276
    %v561 = vunpack.c.h.b16 %v276
    %v562 = vunpack.c.l.b16 %v277
    %v563 = vunpack.c.h.b16 %v277
    %v564 = vunpack.c.l.b16 %v278
    %v565 = vunpack.c.h.b16 %v278
    %v566 = vunpack.c.l.b16 %v279
    %v567 = vunpack.c.h.b16 %v279
    %v568 = vunpack.c.l.b16 %v280
    %v569 = vunpack.c.h.b16 %v280
    %v570 = vunpack.c.l.b16 %v281
    %v571 = vunpack.c.h.b16 %v281
    %v572 = vunpack.c.l.b16 %v282
    %v573 = vunpack.c.h.b16 %v282
    %v574 = vunpack.c.l.b16 %v283
    %v575 = vunpack.c.h.b16 %v283
    %v576 = vunpack.c.l.b16 %v284
    %v577 = vunpack.c.h.b16 %v284
    %v578 = vunpack.c.l.b16 %v285
    %v579 = vunpack.c.h.b16 %v285
    %v580 = vunpack.c.l.b16 %v286
    %v581 = vunpack.c.h.b16 %v286
    %v582 = vunpack.c.l.b16 %v287
    %v583 = vunpack.c.h.b16 %v287
    %v584 = vunpack.c.l.b16 %v288
    %v585 = vunpack.c.h.b16 %v288
    %v586 = vunpack.c.l.b16 %v289
    %v587 = vunpack.c.h.b16 %v289
    %v588 = vpack.c.b16 %v400, %v396
    %v589 = vpack.c.b16 %v401, %v397
    %v590 = vpack.c.b16 %v402, %v398
    %v591 = vpack.c.b16 %v403, %v399
    %v592 = vpack.c.b16 %v408, %v404
    %v593 = vpack.c.b16 %v409, %v405
    %v594 = vpack.c.b16 %v410, %v406
    %v595 = vpack.c.b16 %v411, %v407
    %v596 = vpack.c.b16 %v416, %v412
    %v597 = vpack.c.b16 %v417, %v413
    %v598 = vpack.c.b16 %v418, %v414
    %v599 = vpack.c.b16 %v419, %v415
    %v600 = vpack.c.b16 %v424, %v420
    %v601 = vpack.c.b16 %v425, %v421
    %v602 = vpack.c.b16 %v426, %v422
    %v603 = vpack.c.b16 %v427, %v423
    %v604 = vpack.c.b16 %v432, %v428
    %v605 = vpack.c.b16 %v433, %v429
    %v606 = vpack.c.b16 %v434, %v430
    %v607 = vpack.c.b16 %v435, %v431
    %v608 = vpack.c.b16 %v440, %v436
    %v609 = vpack.c.b16 %v441, %v437
    %v610 = vpack.c.b16 %v442, %v438
    %v611 = vpack.c.b16 %v443, %v439
    %v612 = vpack.c.b16 %v448, %v444
    %v613 = vpack.c.b16 %v449, %v445
    %v614 = vpack.c.b16 %v450, %v446
    %v615 = vpack.c.b16 %v451, %v447
    %v616 = vpack.c.b16 %v456, %v452
    %v617 = vpack.c.b16 %v457, %v453
    %v618 = vpack.c.b16 %v458, %v454
    %v619 = vpack.c.b16 %v459, %v455
    %v620 = vpack.c.b16 %v464, %v460
    %v621 = vpack.c.b16 %v465, %v461
    %v622 = vpack.c.b16 %v466, %v462
    %v623 = vpack.c.b16 %v467, %v463
    %v624 = vpack.c.b16 %v472, %v468
    %v625 = vpack.c.b16 %v473, %v469
    %v626 = vpack.c.b16 %v474, %v470
    %v627 = vpack.c.b16 %v475, %v471
    %v628 = vpack.c.b16 %v480, %v476
    %v629 = vpack.c.b16 %v481, %v477
    %v630 = vpack.c.b16 %v482, %v478
    %v631 = vpack.c.b16 %v483, %v479
    %v632 = vpack.c.b16 %v488, %v484
    %v633 = vpack.c.b16 %v489, %v485
    %v634 = vpack.c.b16 %v490, %v486
    %v635 = vpack.c.b16 %v491, %v487
    %v636 = vpack.c.b16 %v496, %v492
    %v637 = vpack.c.b16 %v497, %v493
    %v638 = vpack.c.b16 %v498, %v494
    %v639 = vpack.c.b16 %v499, %v495
    %v640 = vpack.c.b16 %v504, %v500
    %v641 = vpack.c.b16 %v505, %v501
    %v642 = vpack.c.b16 %v506, %v502
    %v643 = vpack.c.b16 %v507, %v503
    %v644 = vpack.c.b16 %v512, %v508
    %v645 = vpack.c.b16 %v513, %v509
    %v646 = vpack.c.b16 %v514, %v510
    %v647 = vpack.c.b16 %v515, %v511
    %v648 = vpack.c.b16 %v520, %v516
    %v649 = vpack.c.b16 %v521, %v517
    %v650 = vpack.c.b16 %v522, %v518
    %v651 = vpack.c.b16 %v523, %v519
    %v652 = vpack.c.b16 %v528, %v524
    %v653 = vpack.c.b16 %v529, %v525
    %v654 = vpack.c.b16 %v530, %v526
    %v655 = vpack.c.b16 %v531, %v527
    %v656 = vpack.c.b16 %v536, %v532
    %v657 = vpack.c.b16 %v537, %v533
    %v658 = vpack.c.b16 %v538, %v534
    %v659 = vpack.c.b16 %v539, %v535
    %v660 = vpack.c.b16 %v544, %v540
    %v661 = vpack.c.b16 %v545, %v541
    %v662 = vpack.c.b16 %v546, %v542
    %v663 = vpack.c.b16 %v547, %v543
    %v664 = vpack.c.b16 %v552, %v548
    %v665 = vpack.c.b16 %v553, %v549
    %v666 = vpack.c.b16 %v554, %v550
    %v667 = vpack.c.b16 %v555, %v551
    %v668 = vpack.c.b16 %v560, %v556
    %v669 = vpack.c.b16 %v561, %v557
    %v670 = vpack.c.b16 %v562, %v558
    %v671 = vpack.c.b16 %v563, %v559
    %v672 = vpack.c.b16 %v568, %v564
    %v673 = vpack.c.b16 %v569, %v565
    %v674 = vpack.c.b16 %v570, %v566
    %v675 = vpack.c.b16 %v571, %v567
    %v676 = vpack.c.b16 %v576, %v572
    %v677 = vpack.c.b16 %v577, %v573
    %v678 = vpack.c.b16 %v578, %v574
    %v679 = vpack.c.b16 %v579, %v575
    %v680 = vpack.c.b16 %v584, %v580
    %v681 = vpack.c.b16 %v585, %v581
    %v682 = vpack.c.b16 %v586, %v582
    %v683 = vpack.c.b16 %v587, %v583
    %780 = vmatpush.bf16.msra.mxu0 %v616
    %781 = vmatpush.bf16.msra.mxu0 %v612
    %782 = vmatpush.bf16.msra.mxu0 %v608
    %783 = vmatpush.bf16.msra.mxu0 %v604
    %784 = vmatpush.bf16.msra.mxu0 %v600
    %785 = vmatpush.bf16.msra.mxu0 %v596
    %786 = vmatpush.bf16.msra.mxu0 %v592
    %787 = vmatpush.bf16.msra.mxu0 %v588
    %788 = vmatmul.bf16.gmra.mxu0 %v191
    %v789 = vpop.f32.mrf.mxu0
    %v790 = vadd.f32 %v292, %v789
    %v791 = vpop.f32.mrf.mxu0
    %792 = vdwg.mxu0
    %793 = vmatpush.bf16.msra.mxu0 %v648
    %794 = vmatpush.bf16.msra.mxu0 %v644
    %795 = vmatpush.bf16.msra.mxu0 %v640
    %796 = vmatpush.bf16.msra.mxu0 %v636
    %797 = vmatpush.bf16.msra.mxu0 %v632
    %798 = vmatpush.bf16.msra.mxu0 %v628
    %799 = vmatpush.bf16.msra.mxu0 %v624
    %800 = vmatpush.bf16.msra.mxu0 %v620
    %801 = vmatmul.bf16.gmra.mxu0 %v192
    %v802 = vpop.f32.mrf.mxu0
    %v803 = vadd.f32 %v790, %v802
    %v804 = vpop.f32.mrf.mxu0
    %805 = vdwg.mxu0
    %806 = vmatpush.bf16.msra.mxu0 %v680
    %807 = vmatpush.bf16.msra.mxu0 %v676
    %808 = vmatpush.bf16.msra.mxu0 %v672
    %809 = vmatpush.bf16.msra.mxu0 %v668
    %810 = vmatpush.bf16.msra.mxu0 %v664
    %811 = vmatpush.bf16.msra.mxu0 %v660
    %812 = vmatpush.bf16.msra.mxu0 %v656
    %813 = vmatpush.bf16.msra.mxu0 %v652
    %814 = vmatmul.bf16.gmra.mxu0 %v193
    %v815 = vpop.f32.mrf.mxu0
    %v816 = vadd.f32 %v803, %v815
    %v817 = vpop.f32.mrf.mxu0
    %818 = vdwg.mxu0
    %819 = vmatpush.bf16.msra.mxu0 %v617
    %820 = vmatpush.bf16.msra.mxu0 %v613
    %821 = vmatpush.bf16.msra.mxu0 %v609
    %822 = vmatpush.bf16.msra.mxu0 %v605
    %823 = vmatpush.bf16.msra.mxu0 %v601
    %824 = vmatpush.bf16.msra.mxu0 %v597
    %825 = vmatpush.bf16.msra.mxu0 %v593
    %826 = vmatpush.bf16.msra.mxu0 %v589
    %827 = vmatmul.bf16.gmra.mxu0 %v191
    %v828 = vpop.f32.mrf.mxu0
    %v829 = vadd.f32 %v293, %v828
    %v830 = vpop.f32.mrf.mxu0
    %831 = vdwg.mxu0
    %832 = vmatpush.bf16.msra.mxu0 %v649
    %833 = vmatpush.bf16.msra.mxu0 %v645
    %834 = vmatpush.bf16.msra.mxu0 %v641
    %835 = vmatpush.bf16.msra.mxu0 %v637
    %836 = vmatpush.bf16.msra.mxu0 %v633
    %837 = vmatpush.bf16.msra.mxu0 %v629
    %838 = vmatpush.bf16.msra.mxu0 %v625
    %839 = vmatpush.bf16.msra.mxu0 %v621
    %840 = vmatmul.bf16.gmra.mxu0 %v192
    %v841 = vpop.f32.mrf.mxu0
    %v842 = vadd.f32 %v829, %v841
    %v843 = vpop.f32.mrf.mxu0
    %844 = vdwg.mxu0
    %845 = vmatpush.bf16.msra.mxu0 %v681
    %846 = vmatpush.bf16.msra.mxu0 %v677
    %847 = vmatpush.bf16.msra.mxu0 %v673
    %848 = vmatpush.bf16.msra.mxu0 %v669
    %849 = vmatpush.bf16.msra.mxu0 %v665
    %850 = vmatpush.bf16.msra.mxu0 %v661
    %851 = vmatpush.bf16.msra.mxu0 %v657
    %852 = vmatpush.bf16.msra.mxu0 %v653
    %853 = vmatmul.bf16.gmra.mxu0 %v193
    %v854 = vpop.f32.mrf.mxu0
    %v855 = vadd.f32 %v842, %v854
    %v856 = vpop.f32.mrf.mxu0
    %857 = vdwg.mxu0
    %858 = vmatpush.bf16.msra.mxu0 %v618
    %859 = vmatpush.bf16.msra.mxu0 %v614
    %860 = vmatpush.bf16.msra.mxu0 %v610
    %861 = vmatpush.bf16.msra.mxu0 %v606
    %862 = vmatpush.bf16.msra.mxu0 %v602
    %863 = vmatpush.bf16.msra.mxu0 %v598
    %864 = vmatpush.bf16.msra.mxu0 %v594
    %865 = vmatpush.bf16.msra.mxu0 %v590
    %866 = vmatmul.bf16.gmra.mxu0 %v191
    %v867 = vpop.f32.mrf.mxu0
    %v868 = vadd.f32 %v294, %v867
    %v869 = vpop.f32.mrf.mxu0
    %870 = vdwg.mxu0
    %871 = vmatpush.bf16.msra.mxu0 %v650
    %872 = vmatpush.bf16.msra.mxu0 %v646
    %873 = vmatpush.bf16.msra.mxu0 %v642
    %874 = vmatpush.bf16.msra.mxu0 %v638
    %875 = vmatpush.bf16.msra.mxu0 %v634
    %876 = vmatpush.bf16.msra.mxu0 %v630
    %877 = vmatpush.bf16.msra.mxu0 %v626
    %878 = vmatpush.bf16.msra.mxu0 %v622
    %879 = vmatmul.bf16.gmra.mxu0 %v192
    %v880 = vpop.f32.mrf.mxu0
    %v881 = vadd.f32 %v868, %v880
    %v882 = vpop.f32.mrf.mxu0
    %883 = vdwg.mxu0
    %884 = vmatpush.bf16.msra.mxu0 %v682
    %885 = vmatpush.bf16.msra.mxu0 %v678
    %886 = vmatpush.bf16.msra.mxu0 %v674
    %887 = vmatpush.bf16.msra.mxu0 %v670
    %888 = vmatpush.bf16.msra.mxu0 %v666
    %889 = vmatpush.bf16.msra.mxu0 %v662
    %890 = vmatpush.bf16.msra.mxu0 %v658
    %891 = vmatpush.bf16.msra.mxu0 %v654
    %892 = vmatmul.bf16.gmra.mxu0 %v193
    %v893 = vpop.f32.mrf.mxu0
    %v894 = vadd.f32 %v881, %v893
    %v895 = vpop.f32.mrf.mxu0
    %896 = vdwg.mxu0
    %897 = vmatpush.bf16.msra.mxu0 %v619
    %898 = vmatpush.bf16.msra.mxu0 %v615
    %899 = vmatpush.bf16.msra.mxu0 %v611
    %900 = vmatpush.bf16.msra.mxu0 %v607
    %901 = vmatpush.bf16.msra.mxu0 %v603
    %902 = vmatpush.bf16.msra.mxu0 %v599
    %903 = vmatpush.bf16.msra.mxu0 %v595
    %904 = vmatpush.bf16.msra.mxu0 %v591
    %905 = vmatmul.bf16.gmra.mxu0 %v191
    %v906 = vpop.f32.mrf.mxu0
    %v907 = vadd.f32 %v295, %v906
    %v908 = vpop.f32.mrf.mxu0
    %909 = vdwg.mxu0
    %910 = vmatpush.bf16.msra.mxu0 %v651
    %911 = vmatpush.bf16.msra.mxu0 %v647
    %912 = vmatpush.bf16.msra.mxu0 %v643
    %913 = vmatpush.bf16.msra.mxu0 %v639
    %914 = vmatpush.bf16.msra.mxu0 %v635
    %915 = vmatpush.bf16.msra.mxu0 %v631
    %916 = vmatpush.bf16.msra.mxu0 %v627
    %917 = vmatpush.bf16.msra.mxu0 %v623
    %918 = vmatmul.bf16.gmra.mxu0 %v192
    %v919 = vpop.f32.mrf.mxu0
    %v920 = vadd.f32 %v907, %v919
    %v921 = vpop.f32.mrf.mxu0
    %922 = vdwg.mxu0
    %923 = vmatpush.bf16.msra.mxu0 %v683
    %924 = vmatpush.bf16.msra.mxu0 %v679
    %925 = vmatpush.bf16.msra.mxu0 %v675
    %926 = vmatpush.bf16.msra.mxu0 %v671
    %927 = vmatpush.bf16.msra.mxu0 %v667
    %928 = vmatpush.bf16.msra.mxu0 %v663
    %929 = vmatpush.bf16.msra.mxu0 %v659
    %930 = vmatpush.bf16.msra.mxu0 %v655
    %931 = vmatmul.bf16.gmra.mxu0 %v193
    %v932 = vpop.f32.mrf.mxu0
    %v933 = vadd.f32 %v920, %v932
    %v934 = vpop.f32.mrf.mxu0
    %935 = vdwg.mxu0
    %v936 = vmax.f32 %v816, 0.0
    %v937 = vmax.f32 %v855, 0.0
    %v938 = vmax.f32 %v894, 0.0
    %v939 = vmax.f32 %v933, 0.0
    %v940 = vpack.c.bf16 %v936, %v936
    %v941 = vpack.c.bf16 %v937, %v937
    %v942 = vpack.c.bf16 %v938, %v938
    %v943 = vpack.c.bf16 %v939, %v939
    %v944 = vld [vmem:[#allocation11] sm:$0xf]
    %v945 = vld [vmem:[#allocation11 + $0x4] sm:$0xf]
    %v946 = vld [vmem:[#allocation11 + $0x8] sm:$0xf]
    %v947 = vld [vmem:[#allocation11 + $0xc] sm:$0xf]
    %v948 = vld [vmem:[#allocation11 + $0x10] sm:$0xf]
    %v949 = vld [vmem:[#allocation11 + $0x14] sm:$0xf]
    %v950 = vld [vmem:[#allocation11 + $0x18] sm:$0xf]
    %v951 = vld [vmem:[#allocation11 + $0x1c] sm:$0xf]
    %v952 = vld [vmem:[#allocation11 + $0x20] sm:$0xf]
    %v953 = vld [vmem:[#allocation11 + $0x24] sm:$0xf]
    %v954 = vld [vmem:[#allocation11 + $0x28] sm:$0xf]
    %v955 = vld [vmem:[#allocation11 + $0x2c] sm:$0xf]
    %v956 = vld [vmem:[#allocation11 + $0x30] sm:$0xf]
    %v957 = vld [vmem:[#allocation11 + $0x34] sm:$0xf]
    %v958 = vld [vmem:[#allocation11 + $0x38] sm:$0xf]
    %v959 = vld [vmem:[#allocation11 + $0x3c] sm:$0xf]
    %v960 = vld [vmem:[#allocation11 + $0x40] sm:$0xf]
    %v961 = vld [vmem:[#allocation11 + $0x44] sm:$0xf]
    %v962 = vld [vmem:[#allocation11 + $0x48] sm:$0xf]
    %v963 = vld [vmem:[#allocation11 + $0x4c] sm:$0xf]
    %v964 = vld [vmem:[#allocation11 + $0x50] sm:$0xf]
    %v965 = vld [vmem:[#allocation11 + $0x54] sm:$0xf]
    %v966 = vld [vmem:[#allocation11 + $0x58] sm:$0xf]
    %v967 = vld [vmem:[#allocation11 + $0x5c] sm:$0xf]
    %v968 = vld [vmem:[#allocation11 + $0x60] sm:$0xf]
    %v969 = vld [vmem:[#allocation11 + $0x64] sm:$0xf]
    %v970 = vld [vmem:[#allocation11 + $0x68] sm:$0xf]
    %v971 = vld [vmem:[#allocation11 + $0x6c] sm:$0xf]
    %v972 = vld [vmem:[#allocation11 + $0x70] sm:$0xf]
    %v973 = vld [vmem:[#allocation11 + $0x74] sm:$0xf]
    %v974 = vld [vmem:[#allocation11 + $0x78] sm:$0xf]
    %v975 = vld [vmem:[#allocation11 + $0x7c] sm:$0xf]
    %v976 = vld [vmem:[#allocation11 + $0x80] sm:$0xf]
    %v977 = vld [vmem:[#allocation11 + $0x84] sm:$0xf]
    %v978 = vld [vmem:[#allocation11 + $0x88] sm:$0xf]
    %v979 = vld [vmem:[#allocation11 + $0x8c] sm:$0xf]
    %v980 = vld [vmem:[#allocation11 + $0x90] sm:$0xf]
    %v981 = vld [vmem:[#allocation11 + $0x94] sm:$0xf]
    %v982 = vld [vmem:[#allocation11 + $0x98] sm:$0xf]
    %v983 = vld [vmem:[#allocation11 + $0x9c] sm:$0xf]
    %v984 = vld [vmem:[#allocation11 + $0xa0] sm:$0xf]
    %v985 = vld [vmem:[#allocation11 + $0xa4] sm:$0xf]
    %v986 = vld [vmem:[#allocation11 + $0xa8] sm:$0xf]
    %v987 = vld [vmem:[#allocation11 + $0xac] sm:$0xf]
    %v988 = vld [vmem:[#allocation11 + $0xb0] sm:$0xf]
    %v989 = vld [vmem:[#allocation11 + $0xb4] sm:$0xf]
    %v990 = vld [vmem:[#allocation11 + $0xb8] sm:$0xf]
    %v991 = vld [vmem:[#allocation11 + $0xbc] sm:$0xf]
    %v992 = vld [vmem:[#allocation11 + $0xc0] sm:$0xf]
    %v993 = vld [vmem:[#allocation11 + $0xc4] sm:$0xf]
    %v994 = vld [vmem:[#allocation11 + $0xc8] sm:$0xf]
    %v995 = vld [vmem:[#allocation11 + $0xcc] sm:$0xf]
    %v996 = vld [vmem:[#allocation11 + $0xd0] sm:$0xf]
    %v997 = vld [vmem:[#allocation11 + $0xd4] sm:$0xf]
    %v998 = vld [vmem:[#allocation11 + $0xd8] sm:$0xf]
    %v999 = vld [vmem:[#allocation11 + $0xdc] sm:$0xf]
    %v1000 = vld [vmem:[#allocation11 + $0xe0] sm:$0xf]
    %v1001 = vld [vmem:[#allocation11 + $0xe4] sm:$0xf]
    %v1002 = vld [vmem:[#allocation11 + $0xe8] sm:$0xf]
    %v1003 = vld [vmem:[#allocation11 + $0xec] sm:$0xf]
    %v1004 = vld [vmem:[#allocation11 + $0xf0] sm:$0xf]
    %v1005 = vld [vmem:[#allocation11 + $0xf4] sm:$0xf]
    %v1006 = vld [vmem:[#allocation11 + $0xf8] sm:$0xf]
    %v1007 = vld [vmem:[#allocation11 + $0xfc] sm:$0xf]
    %v1008 = vld [vmem:[%s6] sm:$0x1]
    %v1010 = vperm.slane %v1008, 0
    %v1076 = vunpack.c.l.b16 %v944
    %v1077 = vunpack.c.l.b16 %v945
    %v1078 = vunpack.c.l.b16 %v946
    %v1079 = vunpack.c.l.b16 %v947
    %v1080 = vunpack.c.l.b16 %v948
    %v1081 = vunpack.c.l.b16 %v949
    %v1082 = vunpack.c.l.b16 %v950
    %v1083 = vunpack.c.l.b16 %v951
    %v1084 = vunpack.c.l.b16 %v952
    %v1085 = vunpack.c.l.b16 %v953
    %v1086 = vunpack.c.l.b16 %v954
    %v1087 = vunpack.c.l.b16 %v955
    %v1088 = vunpack.c.l.b16 %v956
    %v1089 = vunpack.c.l.b16 %v957
    %v1090 = vunpack.c.l.b16 %v958
    %v1091 = vunpack.c.l.b16 %v959
    %v1092 = vunpack.c.l.b16 %v960
    %v1093 = vunpack.c.l.b16 %v961
    %v1094 = vunpack.c.l.b16 %v962
    %v1095 = vunpack.c.l.b16 %v963
    %v1096 = vunpack.c.l.b16 %v964
    %v1097 = vunpack.c.l.b16 %v965
    %v1098 = vunpack.c.l.b16 %v966
    %v1099 = vunpack.c.l.b16 %v967
    %v1100 = vunpack.c.l.b16 %v968
    %v1101 = vunpack.c.l.b16 %v969
    %v1102 = vunpack.c.l.b16 %v970
    %v1103 = vunpack.c.l.b16 %v971
    %v1104 = vunpack.c.l.b16 %v972
    %v1105 = vunpack.c.l.b16 %v973
    %v1106 = vunpack.c.l.b16 %v974
    %v1107 = vunpack.c.l.b16 %v975
    %v1108 = vunpack.c.l.b16 %v976
    %v1109 = vunpack.c.l.b16 %v977
    %v1110 = vunpack.c.l.b16 %v978
    %v1111 = vunpack.c.l.b16 %v979
    %v1112 = vunpack.c.l.b16 %v980
    %v1113 = vunpack.c.l.b16 %v981
    %v1114 = vunpack.c.l.b16 %v982
    %v1115 = vunpack.c.l.b16 %v983
    %v1116 = vunpack.c.l.b16 %v984
    %v1117 = vunpack.c.l.b16 %v985
    %v1118 = vunpack.c.l.b16 %v986
    %v1119 = vunpack.c.l.b16 %v987
    %v1120 = vunpack.c.l.b16 %v988
    %v1121 = vunpack.c.l.b16 %v989
    %v1122 = vunpack.c.l.b16 %v990
    %v1123 = vunpack.c.l.b16 %v991
    %v1124 = vunpack.c.l.b16 %v992
    %v1125 = vunpack.c.l.b16 %v993
    %v1126 = vunpack.c.l.b16 %v994
    %v1127 = vunpack.c.l.b16 %v995
    %v1128 = vunpack.c.l.b16 %v996
    %v1129 = vunpack.c.l.b16 %v997
    %v1130 = vunpack.c.l.b16 %v998
    %v1131 = vunpack.c.l.b16 %v999
    %v1132 = vunpack.c.l.b16 %v1000
    %v1133 = vunpack.c.l.b16 %v1001
    %v1134 = vunpack.c.l.b16 %v1002
    %v1135 = vunpack.c.l.b16 %v1003
    %v1136 = vunpack.c.l.b16 %v1004
    %v1137 = vunpack.c.l.b16 %v1005
    %v1138 = vunpack.c.l.b16 %v1006
    %v1139 = vunpack.c.l.b16 %v1007
    %v1140 = vpack.c.b16 %v1077, %v1076
    %v1141 = vpack.c.b16 %v1079, %v1078
    %v1142 = vpack.c.b16 %v1081, %v1080
    %v1143 = vpack.c.b16 %v1083, %v1082
    %v1144 = vpack.c.b16 %v1085, %v1084
    %v1145 = vpack.c.b16 %v1087, %v1086
    %v1146 = vpack.c.b16 %v1089, %v1088
    %v1147 = vpack.c.b16 %v1091, %v1090
    %v1148 = vpack.c.b16 %v1093, %v1092
    %v1149 = vpack.c.b16 %v1095, %v1094
    %v1150 = vpack.c.b16 %v1097, %v1096
    %v1151 = vpack.c.b16 %v1099, %v1098
    %v1152 = vpack.c.b16 %v1101, %v1100
    %v1153 = vpack.c.b16 %v1103, %v1102
    %v1154 = vpack.c.b16 %v1105, %v1104
    %v1155 = vpack.c.b16 %v1107, %v1106
    %v1156 = vpack.c.b16 %v1109, %v1108
    %v1157 = vpack.c.b16 %v1111, %v1110
    %v1158 = vpack.c.b16 %v1113, %v1112
    %v1159 = vpack.c.b16 %v1115, %v1114
    %v1160 = vpack.c.b16 %v1117, %v1116
    %v1161 = vpack.c.b16 %v1119, %v1118
    %v1162 = vpack.c.b16 %v1121, %v1120
    %v1163 = vpack.c.b16 %v1123, %v1122
    %v1164 = vpack.c.b16 %v1125, %v1124
    %v1165 = vpack.c.b16 %v1127, %v1126
    %v1166 = vpack.c.b16 %v1129, %v1128
    %v1167 = vpack.c.b16 %v1131, %v1130
    %v1168 = vpack.c.b16 %v1133, %v1132
    %v1169 = vpack.c.b16 %v1135, %v1134
    %v1170 = vpack.c.b16 %v1137, %v1136
    %v1171 = vpack.c.b16 %v1139, %v1138
    %1204 = vmatpush.bf16.msra.mxu0 %v1147
    %1205 = vmatpush.bf16.msra.mxu0 %v1146
    %1206 = vmatpush.bf16.msra.mxu0 %v1145
    %1207 = vmatpush.bf16.msra.mxu0 %v1144
    %1208 = vmatpush.bf16.msra.mxu0 %v1143
    %1209 = vmatpush.bf16.msra.mxu0 %v1142
    %1210 = vmatpush.bf16.msra.mxu0 %v1141
    %1211 = vmatpush.bf16.msra.mxu0 %v1140
    %1212 = vmatmul.bf16.gmra.mxu0 %v940
    %v1213 = vpop.f32.mrf.mxu0
    %v1214 = vadd.f32 %v1010, %v1213
    %v1215 = vpop.f32.mrf.mxu0
    %1216 = vdwg.mxu0
    %1217 = vmatpush.bf16.msra.mxu0 %v1155
    %1218 = vmatpush.bf16.msra.mxu0 %v1154
    %1219 = vmatpush.bf16.msra.mxu0 %v1153
    %1220 = vmatpush.bf16.msra.mxu0 %v1152
    %1221 = vmatpush.bf16.msra.mxu0 %v1151
    %1222 = vmatpush.bf16.msra.mxu0 %v1150
    %1223 = vmatpush.bf16.msra.mxu0 %v1149
    %1224 = vmatpush.bf16.msra.mxu0 %v1148
    %1225 = vmatmul.bf16.gmra.mxu0 %v941
    %v1226 = vpop.f32.mrf.mxu0
    %v1227 = vadd.f32 %v1214, %v1226
    %v1228 = vpop.f32.mrf.mxu0
    %1229 = vdwg.mxu0
    %1230 = vmatpush.bf16.msra.mxu0 %v1163
    %1231 = vmatpush.bf16.msra.mxu0 %v1162
    %1232 = vmatpush.bf16.msra.mxu0 %v1161
    %1233 = vmatpush.bf16.msra.mxu0 %v1160
    %1234 = vmatpush.bf16.msra.mxu0 %v1159
    %1235 = vmatpush.bf16.msra.mxu0 %v1158
    %1236 = vmatpush.bf16.msra.mxu0 %v1157
    %1237 = vmatpush.bf16.msra.mxu0 %v1156
    %1238 = vmatmul.bf16.gmra.mxu0 %v942
    %v1239 = vpop.f32.mrf.mxu0
    %v1240 = vadd.f32 %v1227, %v1239
    %v1241 = vpop.f32.mrf.mxu0
    %1242 = vdwg.mxu0
    %1243 = vmatpush.bf16.msra.mxu0 %v1171
    %1244 = vmatpush.bf16.msra.mxu0 %v1170
    %1245 = vmatpush.bf16.msra.mxu0 %v1169
    %1246 = vmatpush.bf16.msra.mxu0 %v1168
    %1247 = vmatpush.bf16.msra.mxu0 %v1167
    %1248 = vmatpush.bf16.msra.mxu0 %v1166
    %1249 = vmatpush.bf16.msra.mxu0 %v1165
    %1250 = vmatpush.bf16.msra.mxu0 %v1164
    %1251 = vmatmul.bf16.gmra.mxu0 %v943
    %v1252 = vpop.f32.mrf.mxu0
    %v1253 = vadd.f32 %v1240, %v1252
    %v1254 = vpop.f32.mrf.mxu0
    %1255 = vdwg.mxu0
    %1256 = vst [vmem:[#allocation13] sm:$0xff] %v1253
    // Predicated region
    $region54: #{tpu_custom_call.1} parent=1 // pred_check
      _
    $region55: #{tpu_custom_call.1} parent=1 // pred_check_branch
      %1258 = sbr.rel (0) target = $region57
    $region56: #{tpu_custom_call.1} parent=1 // pred_region
      %1260 = vsyncadd [#allocation4], 0
      %s1262 = sshll.u32 [#allocation13], 4
      %s1263 = int_to_ptr.vmem [resolvable:$true] %s1262
      %s1264 = sshll.u32 %s7, 4
      %s1265 = int_to_ptr.hbm [resolvable:$true] %s1264
      %1267 = dma.vmem_to_hbm [thread:$0]  %s1263, 128, %s1265, [#allocation4]
    $region57: #{tpu_custom_call.1} parent=1 // pred_fallthru
      _
    // Predicated region
    $region58: #{tpu_custom_call.1} parent=1 // pred_check
      _
    $region59: #{tpu_custom_call.1} parent=1 // pred_check_branch
      %1269 = sbr.rel (0) target = $region61
    $region60: #{tpu_custom_call.1} parent=1 // pred_region
      %1271 = dma.done [#allocation4], 128
    $region61: #{tpu_custom_call.1} parent=1 // pred_fallthru
      _
    %1272 = vsyncpa [#allocation3], 1
    %1273 = vsyncpa [#allocation6], 1
    %1274 = vsyncpa [#allocation9], 1
    %1275 = vsyncpa [#allocation12], 1
    %1276 = vsyncpa [#allocation4], 1

</llo_original>
